<compile_context>
chip_gen: v7x
topology: tpu7x:2x2x1
jax: 0.10.0
libtpu: 0.0.40
codegen_flags: <defaults>
</compile_context>

<pallas_src>
import functools

import jax
import jax.numpy as jnp
from jax.experimental import pallas as pl
from jax.experimental.pallas import tpu as pltpu


def _round_up(a, b):
    return -(-a // b) * b


# --------------------------------------------------------------------------- #
# Kernel
# --------------------------------------------------------------------------- #
def _gated_attn_kernel(x_ref, wab_ref, bab_ref, wc_ref, bc_ref, out_ref, *,
                       dp, c_is_one):
    # Cast the streamed x tile to bf16 in-kernel (VPU cast is free filler);
    # x arrives in its HBM dtype so the dominant HBM stream is read only once.
    x = x_ref[...].astype(wab_ref.dtype)                      # (tn, L) bf16
    # Fused attention_a | attention_b projection: one (tn, 2*Dp) MXU pass.
    h = jnp.dot(x, wab_ref[...], preferred_element_type=jnp.float32)
    h = h + bab_ref[...]                                      # (tn, 2*Dp) f32
    a = jnp.tanh(h[:, :dp])                                   # (tn, Dp) f32
    b = jax.nn.sigmoid(h[:, dp:])                             # (tn, Dp) f32
    gated = a * b                                             # (tn, Dp) f32
    if c_is_one:
        # n_classes == 1: VPU multiply + XLU lane reduce in f32 instead of a
        # (tn, Dp) @ (Dp, 1) MXU pass that would use 1/256 of the output lanes.
        out = jnp.sum(gated * wc_ref[...], axis=-1, keepdims=True)
    else:
        out = jnp.dot(gated.astype(wc_ref.dtype), wc_ref[...],
                      preferred_element_type=jnp.float32)
    out = out + bc_ref[...]                                   # (tn, C) f32
    out_ref[...] = out.astype(out_ref.dtype)


# --------------------------------------------------------------------------- #
# One-time parameter preparation (hoisted out of the per-call path)
# --------------------------------------------------------------------------- #
def prepare_attn_gated_params(wa, ba, wb, bb, wc, bc, *,
                              compute_dtype=jnp.bfloat16):
    """Fuse / pad / cast the weights once.

    Weights use (in_features, out_features) layout (transpose of nn.Linear's
    .weight). D is zero-padded to a multiple of 128 so the fused-projection
    lane slices stay tile aligned; the padding is numerically neutral.
    """
    L, D = wa.shape
    C = wc.shape[1]
    Dp = _round_up(D, 128)
    pad = Dp - D
    ba = jnp.asarray(ba).reshape(1, D)
    bb = jnp.asarray(bb).reshape(1, D)
    if pad:
        wa = jnp.pad(wa, ((0, 0), (0, pad)))
        wb = jnp.pad(wb, ((0, 0), (0, pad)))
        ba = jnp.pad(ba, ((0, 0), (0, pad)))
        bb = jnp.pad(bb, ((0, 0), (0, pad)))
        wc = jnp.pad(wc, ((0, pad), (0, 0)))
    wab = jnp.concatenate([wa, wb], axis=1).astype(compute_dtype)   # (L, 2Dp)
    bab = jnp.concatenate([ba, bb], axis=1).astype(jnp.float32)     # (1, 2Dp)
    c_is_one = (C == 1)
    if c_is_one:
        wc_p = jnp.transpose(wc).astype(jnp.float32)                # (1, Dp) f32
    else:
        wc_p = wc.astype(compute_dtype)                             # (Dp, C) bf16
    bc_p = jnp.asarray(bc).reshape(1, C).astype(jnp.float32)        # (1, C)
    return {"wab": wab, "bab": bab, "wc": wc_p, "bc": bc_p,
            "L": L, "Dp": Dp, "C": C, "c_is_one": c_is_one}


# --------------------------------------------------------------------------- #
# Tiling / VMEM sizing
# --------------------------------------------------------------------------- #
def _vmem_capacity_bytes():
    try:
        return int(pltpu.get_tpu_info().vmem_capacity_bytes)
    except Exception:
        return 64 * 1024 * 1024          # conservative (v7x per-core VMEM)


def _footprint_bytes(tile_n, l, dp, c, x_itemsize, out_itemsize, c_is_one):
    dp2 = 2 * dp
    x_buf = 2 * tile_n * l * x_itemsize                   # double-buffered x
    w_buf = l * dp2 * 2 + dp2 * 4                         # wab bf16 + bab f32
    w_buf += dp * 4 if c_is_one else dp * c * 2           # wc
    w_buf += c * 4                                        # bc
    out_buf = 2 * tile_n * c * out_itemsize               # double-buffered out
    temps = tile_n * l * 2 + 3 * tile_n * dp2 * 4         # bf16 x + h/a,b/gated
    return x_buf + w_buf + out_buf + temps


def _pick_tile_n(n, l, dp, c, x_itemsize, out_itemsize, c_is_one, budget):
    dp2 = 2 * dp
    fixed = _footprint_bytes(0, l, dp, c, x_itemsize, out_itemsize, c_is_one)
    per_row = 2 * l * x_itemsize + l * 2 + 3 * dp2 * 4 + 2 * c * out_itemsize
    t = (budget - fixed) // max(1, per_row)
    t = max(8, min(1024, (int(t) // 8) * 8))
    # Keep >= ~8 grid steps: v7x megacore sharding + double-buffer overlap.
    t = min(t, _round_up(pl.cdiv(n, 8), 8))
    t = max(8, t)
    if t >= n:
        t = n                            # single full-extent block is legal
    return int(t)


def _const_spec(shape):
    """Constant-index (grid-invariant) block: request single buffering."""
    index_map = lambda i: (0,) * len(shape)
    try:
        return pl.BlockSpec(shape, index_map, pipeline_mode=pl.Buffered(1))
    except Exception:
        return pl.BlockSpec(shape, index_map)


# --------------------------------------------------------------------------- #
# Forward pass
# --------------------------------------------------------------------------- #
def attn_net_gated_prepared(x, params, *, tile_n=None):
    """Forward pass with pre-fused weights. Returns (A, x) like the module."""
    N, L = x.shape
    assert L == params["L"], "x feature dim does not match prepared weights"
    Dp, C, c_is_one = params["Dp"], params["C"], params["c_is_one"]
    wab, bab, wc_p, bc_p = params["wab"], params["bab"], params["wc"], params["bc"]

    out_dtype = x.dtype
    x_itemsize = x.dtype.itemsize
    out_itemsize = jnp.dtype(out_dtype).itemsize

    vmem_cap = _vmem_capacity_bytes()
    work_budget = vmem_cap // 4              # 32 MiB v5e/v6e, 16 MiB v7x

    if tile_n is None:
        tile_n = _pick_tile_n(N, L, Dp, C, x_itemsize, out_itemsize, c_is_one,
                              work_budget)
    tile_n = int(tile_n)
    if tile_n >= N:
        tile_n = N
    else:
        tile_n = max(8, (tile_n // 8) * 8)

    footprint = _footprint_bytes(tile_n, L, Dp, C, x_itemsize, out_itemsize,
                                 c_is_one)
    vmem_limit = int(min(vmem_cap * 3 // 4,
                         max(8 * 1024 * 1024, int(footprint * 1.4))))

    grid = (pl.cdiv(N, tile_n),)

    w_bytes = (wab.size * wab.dtype.itemsize + bab.size * 4
               + wc_p.size * wc_p.dtype.itemsize + bc_p.size * 4)
    cost = pl.CostEstimate(
        flops=2 * N * L * (2 * Dp) + 2 * N * Dp * C,
        transcendentals=2 * N * Dp,
        bytes_accessed=int(N * L * x_itemsize + w_bytes
                           + N * C * out_itemsize),
    )

    wc_block = (1, Dp) if c_is_one else (Dp, C)

    A = pl.pallas_call(
        functools.partial(_gated_attn_kernel, dp=Dp, c_is_one=c_is_one),
        out_shape=jax.ShapeDtypeStruct((N, C), out_dtype),
        grid_spec=pltpu.PrefetchScalarGridSpec(
            num_scalar_prefetch=0,
            grid=grid,
            in_specs=[
                pl.BlockSpec((tile_n, L), lambda i: (i, 0)),    # x tile (HBM dtype)
                _const_spec((L, 2 * Dp)),                       # Wa | Wb (bf16)
                _const_spec((1, 2 * Dp)),                       # ba | bb (f32)
                _const_spec(wc_block),                          # Wc
                _const_spec((1, C)),                            # bc (f32)
            ],
            out_specs=pl.BlockSpec((tile_n, C), lambda i: (i, 0)),
        ),
        compiler_params=pltpu.CompilerParams(
            dimension_semantics=("parallel",),
            vmem_limit_bytes=vmem_limit),
        cost_estimate=cost,
    )(x, wab, bab, wc_p, bc_p)

    # The module returns the untouched input alongside the attention scores.
    return A, x


def attn_net_gated(x, wa, ba, wb, bb, wc, bc, *, tile_n=None,
                   compute_dtype=jnp.bfloat16):
    """Convenience wrapper: prep + forward (prefer prepping once and reusing)."""
    params = prepare_attn_gated_params(wa, ba, wb, bb, wc, bc,
                                       compute_dtype=compute_dtype)
    return attn_net_gated_prepared(x, params, tile_n=tile_n)


# --------------------------------------------------------------------------- #
# Self-test
# --------------------------------------------------------------------------- #
def _init_linear(key, fan_in, fan_out, dtype=jnp.float32):
    """Deterministic init mimicking nn.Linear's uniform(-1/sqrt(fan_in), ...)."""
    kw, kb = jax.random.split(key)
    bound = 1.0 / jnp.sqrt(fan_in)
    w = jax.random.uniform(kw, (fan_in, fan_out), dtype, -bound, bound)
    b = jax.random.uniform(kb, (1, fan_out), dtype, -bound, bound)
    return w, b


def _reference(x, wa, ba, wb, bb, wc, bc):
    """Pure-JAX reference matching the kernel's bf16-matmul / f32-accumulate numerics."""
    bf16, f32 = jnp.bfloat16, jnp.float32
    a = jnp.tanh(jnp.dot(x.astype(bf16), wa.astype(bf16),
                         preferred_element_type=f32) + ba)
    b = jax.nn.sigmoid(jnp.dot(x.astype(bf16), wb.astype(bf16),
                               preferred_element_type=f32) + bb)
    A = jnp.dot(a * b, wc.astype(f32), preferred_element_type=f32) + bc
    return A.astype(x.dtype)


if __name__ == "__main__":
    key = jax.random.PRNGKey(0)

    # Case 1: canonical MIL head (n_classes == 1), multi-tile + ragged last tile.
    N, L, D, C = 40, 256, 128, 1
    kx, ka, kb, kc = jax.random.split(key, 4)
    x = jax.random.normal(kx, (N, L), jnp.float32)
    wa, ba = _init_linear(ka, L, D)            # attention_a Linear(L, D)
    wb, bb = _init_linear(kb, L, D)            # attention_b Linear(L, D)
    wc, bc = _init_linear(kc, D, C)            # attention_c Linear(D, 1)

    params = prepare_attn_gated_params(wa, ba, wb, bb, wc, bc)
    A, x_out = attn_net_gated_prepared(x, params, tile_n=16)   # explicit tiling
    A2, _ = attn_net_gated_prepared(x, params)                 # auto tiling
    jax.block_until_ready((A, A2, x_out))

    A_ref = _reference(x, wa, ba, wb, bb, wc, bc)
    assert A.shape == (N, C)
    assert jnp.allclose(A, A_ref, atol=1e-2, rtol=1e-2)
    assert jnp.allclose(A2, A_ref, atol=1e-2, rtol=1e-2)
    assert jnp.array_equal(x_out, x)

    # Case 2: D not a multiple of 128 (exercises zero-padding) and n_classes > 1
    # (exercises the MXU final-projection branch).
    N2, L2, D2, C2 = 24, 192, 96, 3
    k2 = jax.random.split(key, 4)
    x2 = jax.random.normal(k2[0], (N2, L2), jnp.float32)
    wa2, ba2 = _init_linear(k2[1], L2, D2)
    wb2, bb2 = _init_linear(k2[2], L2, D2)
    wc2, bc2 = _init_linear(k2[3], D2, C2)

    B, x2_out = attn_net_gated(x2, wa2, ba2, wb2, bb2, wc2, bc2)
    jax.block_until_ready(B)
    B_ref = _reference(x2, wa2, ba2, wb2, bb2, wc2, bc2)
    assert B.shape == (N2, C2)
    assert jnp.allclose(B, B_ref, atol=1e-2, rtol=1e-2)
    assert jnp.array_equal(x2_out, x2)

    print("KERNEL_OK")
</pallas_src>

<mosaic_0001>
module attributes {stable_mosaic.version = 11 : i64} {
  func.func @_gated_attn_kernel(%arg0: i32, %arg1: memref<16x256xf32, #tpu.memory_space<vmem>>, %arg2: memref<256x256xbf16, #tpu.memory_space<vmem>>, %arg3: memref<1x256xf32, #tpu.memory_space<vmem>>, %arg4: memref<1x128xf32, #tpu.memory_space<vmem>>, %arg5: memref<1x1xf32, #tpu.memory_space<vmem>>, %arg6: memref<16x1xf32, #tpu.memory_space<vmem>>) attributes {dimension_semantics = [#tpu.dimension_semantics<parallel>], iteration_bounds = array<i64: 3>, scalar_prefetch = 0 : i64, scratch_operands = 0 : i64, tpu.core_type = #tpu.core_type<tc>, window_params = [{transform_indices = @transform_0, window_bounds = array<i64: 16, 256>}, {pipeline_mode = #tpu.pipeline_mode<synchronous>, transform_indices = @transform_1, window_bounds = array<i64: 256, 256>}, {pipeline_mode = #tpu.pipeline_mode<synchronous>, transform_indices = @transform_2, window_bounds = array<i64: 1, 256>}, {pipeline_mode = #tpu.pipeline_mode<synchronous>, transform_indices = @transform_3, window_bounds = array<i64: 1, 128>}, {pipeline_mode = #tpu.pipeline_mode<synchronous>, transform_indices = @transform_4, window_bounds = array<i64: 1, 1>}, {transform_indices = @transform_5, window_bounds = array<i64: 16, 1>}]} {
    %c0 = arith.constant 0 : index
    %c0_0 = arith.constant 0 : index
    %0 = vector.load %arg1[%c0, %c0_0] : memref<16x256xf32, #tpu.memory_space<vmem>>, vector<16x256xf32>
    %1 = arith.truncf %0 : vector<16x256xf32> to vector<16x256xbf16>
    %c0_1 = arith.constant 0 : index
    %c0_2 = arith.constant 0 : index
    %2 = vector.load %arg2[%c0_1, %c0_2] : memref<256x256xbf16, #tpu.memory_space<vmem>>, vector<256x256xbf16>
    %cst = arith.constant dense<0.000000e+00> : vector<16x256xf32>
    %3 = tpu.matmul %1, %2, %cst {dimension_numbers = #tpu.dot_dimension_numbers<[1], [0], [0], [1], [0, 0, 1, 1], [], []>} : vector<16x256xbf16>, vector<256x256xbf16>, vector<16x256xf32> -> vector<16x256xf32>
    %c0_3 = arith.constant 0 : index
    %c0_4 = arith.constant 0 : index
    %4 = vector.load %arg3[%c0_3, %c0_4] : memref<1x256xf32, #tpu.memory_space<vmem>>, vector<1x256xf32>
    %5 = vector.broadcast %4 : vector<1x256xf32> to vector<16x256xf32>
    %6 = arith.addf %3, %5 : vector<16x256xf32>
    %7 = vector.extract_strided_slice %6 {offsets = [0, 0], sizes = [16, 128], strides = [1, 1]} : vector<16x256xf32> to vector<16x128xf32>
    %8 = math.tanh %7 : vector<16x128xf32>
    %9 = vector.extract_strided_slice %6 {offsets = [0, 128], sizes = [16, 128], strides = [1, 1]} : vector<16x256xf32> to vector<16x128xf32>
    %10 = arith.negf %9 : vector<16x128xf32>
    %11 = math.exp %10 : vector<16x128xf32>
    %cst_5 = arith.constant 1.000000e+00 : f32
    %12 = vector.broadcast %cst_5 : f32 to vector<16x128xf32>
    %13 = arith.addf %12, %11 : vector<16x128xf32>
    %14 = arith.divf %12, %13 : vector<16x128xf32>
    %15 = arith.mulf %8, %14 : vector<16x128xf32>
    %c0_6 = arith.constant 0 : index
    %c0_7 = arith.constant 0 : index
    %16 = vector.load %arg4[%c0_6, %c0_7] : memref<1x128xf32, #tpu.memory_space<vmem>>, vector<1x128xf32>
    %17 = vector.broadcast %16 : vector<1x128xf32> to vector<16x128xf32>
    %18 = arith.mulf %15, %17 : vector<16x128xf32>
    %cst_8 = arith.constant dense<0.000000e+00> : vector<16xf32>
    %19 = vector.multi_reduction <add>, %18, %cst_8 [1] : vector<16x128xf32> to vector<16xf32>
    %20 = vector.shape_cast %19 : vector<16xf32> to vector<16x1xf32>
    %c0_9 = arith.constant 0 : index
    %c0_10 = arith.constant 0 : index
    %21 = vector.load %arg5[%c0_9, %c0_10] : memref<1x1xf32, #tpu.memory_space<vmem>>, vector<1x1xf32>
    %22 = vector.broadcast %21 : vector<1x1xf32> to vector<16x1xf32>
    %23 = arith.addf %20, %22 : vector<16x1xf32>
    %c0_11 = arith.constant 0 : index
    %c0_12 = arith.constant 0 : index
    %24 = vector.load %arg6[%c0_11, %c0_12] : memref<16x1xf32, #tpu.memory_space<vmem>>, vector<16x1xf32>
    tpu.vector_store %arg6[%c0_11, %c0_12], %23 {strides = array<i32>} : memref<16x1xf32, #tpu.memory_space<vmem>>, vector<16x1xf32>,
    return
  }
  func.func @transform_0(%arg0: i32) -> (i32, i32) {
    %c0_i32 = arith.constant 0 : i32
    %c0_i32_0 = arith.constant 0 : i32
    return %arg0, %c0_i32 : i32, i32
  }
  func.func @transform_1(%arg0: i32) -> (i32, i32) {
    %c0_i32 = arith.constant 0 : i32
    %c0_i32_0 = arith.constant 0 : i32
    %c0_i32_1 = arith.constant 0 : i32
    return %c0_i32, %c0_i32_0 : i32, i32
  }
  func.func @transform_2(%arg0: i32) -> (i32, i32) {
    %c0_i32 = arith.constant 0 : i32
    %c0_i32_0 = arith.constant 0 : i32
    %c0_i32_1 = arith.constant 0 : i32
    return %c0_i32, %c0_i32_0 : i32, i32
  }
  func.func @transform_3(%arg0: i32) -> (i32, i32) {
    %c0_i32 = arith.constant 0 : i32
    %c0_i32_0 = arith.constant 0 : i32
    %c0_i32_1 = arith.constant 0 : i32
    return %c0_i32, %c0_i32_0 : i32, i32
  }
  func.func @transform_4(%arg0: i32) -> (i32, i32) {
    %c0_i32 = arith.constant 0 : i32
    %c0_i32_0 = arith.constant 0 : i32
    %c0_i32_1 = arith.constant 0 : i32
    return %c0_i32, %c0_i32_0 : i32, i32
  }
  func.func @transform_5(%arg0: i32) -> (i32, i32) {
    %c0_i32 = arith.constant 0 : i32
    %c0_i32_0 = arith.constant 0 : i32
    return %arg0, %c0_i32 : i32, i32
  }
}

</mosaic_0001>

<llo_original>
// kernel: tpu_custom_call.1
$region0: #{tpu_custom_call.1}
  #allocation0 [shape = 'u32[]', space=smem, size = 0x4, offset = 0x4, fixed_abs, tag = 'smem constant byte address 0x4 - core index']
  #allocation1 [shape = 'u32[144,128]{1,0:T(1,128)}', space=vmem, size = 0x12000, scoped, tag = 'internal scratch']
  #allocation2 [shape = 'f32[1,1]{1,0:T(1,128)S(1)}', space=vmem, size = 0x200, scoped, tag = 'scoped memory for tpu_custom_call.1']
  %s0 = inlined_call_operand.hbm [shape: f32[40,256], index: 0, kind: input, shape index: {}]
  %s1 = inlined_call_operand.hbm [shape: bf16[256,256], index: 1, kind: input, shape index: {}]
  %s2 = inlined_call_operand.vmem [shape: f32[1,256], index: 2, kind: input, shape index: {}]
  %s3 = inlined_call_operand.vmem [shape: f32[1,128], index: 3, kind: input, shape index: {}]
  %s4 = inlined_call_operand.<no memory space> [shape: f32[1,1], index: 4, kind: input, shape index: {}]
  %s5 = inlined_call_operand.vmem [shape: f32[40,1], index: 5, kind: output, shape index: {}]
  %s6 = sld [smem:[#allocation0]]
  $region109: #{tpu_custom_call.1} parent=0
    _
  %s8 = ssub.s32 1, %s6
  %s9 = scalar_select 0, %s8, %s6
  %v10 = vstv %s4
  %11 = vst [vmem:[#allocation2] sm:$0x1] %v10
  $region1: #{tpu_custom_call.1} parent=0
    #allocation3 [shape = 'u8[32768]{0}', space=vmem, size = 0x8000, scoped, tag = 'input window, operand 0']
    #allocation4 [shape = 's32[2]{0}', space=sflag, size = 0x8, scoped, tag = 'scoped memory for tpu_custom_call.1']
    #allocation5 [shape = 'u8[131072]{0}', space=vmem, size = 0x20000, scoped, tag = 'input window, operand 1, single buffered']
    #allocation6 [shape = 's32[1]{0}', space=sflag, size = 0x4, scoped, tag = 'scoped memory for tpu_custom_call.1']
    #allocation7 [shape = 'u8[16384]{0}', space=vmem, size = 0x4000, scoped, tag = 'output window, operand 0']
    %12 = vsyncpa [#allocation4], 0
    %s13 = scalar_lea.sflag [#allocation4], 1
    %14 = vsyncpa %s13, 0
    %15 = vsyncpa [#allocation6], 0
    loop: start=0, step=1, limit=5
    $region2: #{tpu_custom_call.1} parent=1 // loop_pre_header
      _
    $region3: #{tpu_custom_call.1} parent=1 // loop_header
      %s17 = sphi 0, %s21
      %p18 = scmp.ge.s32.totalorder %s17, 5
      %s27 = sphi 0, %s29
      %s30 = sphi 0, %s27
      %s31 = sphi 0, %s30
      %s47 = sphi 0, %s31
      %s51 = sphi 0, %s51
      %s53 = sphi 0, %s51
      %s54 = sphi 0, %s53
      %s68 = sphi 0, %s54
      %s72 = sphi 0, %s72
      %s74 = sphi 0, %s72
      %s75 = sphi 0, %s74
      %s89 = sphi 0, %s75
      %s93 = sphi 0, %s93
      %s95 = sphi 0, %s93
      %s96 = sphi 0, %s95
      %s110 = sphi 0, %s96
      %s114 = sphi 0, %s114
      %s116 = sphi 0, %s114
      %s117 = sphi 0, %s116
      %s131 = sphi 0, %s117
      %s137 = sphi 0, %s139
      %s140 = sphi 0, %s137
      %s141 = sphi 0, %s140
      %s157 = sphi 0, %s141
    $region4: #{tpu_custom_call.1} parent=1 // loop_header_branch
      %20 = sbr.rel (%p18) target = $region8
    $region5: #{tpu_custom_call.1} parent=1 // loop_body
      %s22 = ssub.s32 %s17, 1
      %s23 = ssub.s32 %s17, 2
      %s24 = sadd.s32 %s17, 1
      %s25 = ssub.s32 %s17, %s24
      %p26 = scmp.eq.s32.totalorder %s25, 0
      %s28 = sadd.s32 %s27, 1
      %s29 = scalar_select %p26, %s27, %s28
      %p32 = pneg %p26
      %p33 = scmp.eq.s32.totalorder %s17, 2
      %p34 = por %p32, %p33
      %p35 = scmp.ne.s32.totalorder %s27, %s30
      %p36 = scmp.eq.s32.totalorder %s17, 0
      %p37 = por %p35, %p36
      %p38 = scmp.ne.s32.totalorder %s27, %s30
      %p39 = scmp.eq.s32.totalorder %s22, 2
      %p40 = por %p38, %p39
      %p41 = scmp.ne.s32.totalorder %s30, %s31
      %p42 = scmp.eq.s32.totalorder %s22, 0
      %p43 = por %p41, %p42
      %p44 = scmp.ne.s32.totalorder %s30, %s31
      %p45 = scmp.eq.s32.totalorder %s23, 2
      %p46 = por %p44, %p45
      %p48 = scmp.ne.s32.totalorder %s31, %s47
      %p49 = scmp.eq.s32.totalorder %s23, 0
      %p50 = por %p48, %p49
      %s52 = sadd.s32 %s51, 1
      %p55 = scmp.eq.s32.totalorder %s17, 2
      %p56 = scmp.ne.s32.totalorder %s51, %s53
      %p57 = scmp.eq.s32.totalorder %s17, 0
      %p58 = por %p56, %p57
      %p59 = scmp.ne.s32.totalorder %s51, %s53
      %p60 = scmp.eq.s32.totalorder %s22, 2
      %p61 = por %p59, %p60
      %p62 = scmp.ne.s32.totalorder %s53, %s54
      %p63 = scmp.eq.s32.totalorder %s22, 0
      %p64 = por %p62, %p63
      %p65 = scmp.ne.s32.totalorder %s53, %s54
      %p66 = scmp.eq.s32.totalorder %s23, 2
      %p67 = por %p65, %p66
      %p69 = scmp.ne.s32.totalorder %s54, %s68
      %p70 = scmp.eq.s32.totalorder %s23, 0
      %p71 = por %p69, %p70
      %s73 = sadd.s32 %s72, 1
      %p76 = scmp.eq.s32.totalorder %s17, 2
      %p77 = scmp.ne.s32.totalorder %s72, %s74
      %p78 = scmp.eq.s32.totalorder %s17, 0
      %p79 = por %p77, %p78
      %p80 = scmp.ne.s32.totalorder %s72, %s74
      %p81 = scmp.eq.s32.totalorder %s22, 2
      %p82 = por %p80, %p81
      %p83 = scmp.ne.s32.totalorder %s74, %s75
      %p84 = scmp.eq.s32.totalorder %s22, 0
      %p85 = por %p83, %p84
      %p86 = scmp.ne.s32.totalorder %s74, %s75
      %p87 = scmp.eq.s32.totalorder %s23, 2
      %p88 = por %p86, %p87
      %p90 = scmp.ne.s32.totalorder %s75, %s89
      %p91 = scmp.eq.s32.totalorder %s23, 0
      %p92 = por %p90, %p91
      %s94 = sadd.s32 %s93, 1
      %p97 = scmp.eq.s32.totalorder %s17, 2
      %p98 = scmp.ne.s32.totalorder %s93, %s95
      %p99 = scmp.eq.s32.totalorder %s17, 0
      %p100 = por %p98, %p99
      %p101 = scmp.ne.s32.totalorder %s93, %s95
      %p102 = scmp.eq.s32.totalorder %s22, 2
      %p103 = por %p101, %p102
      %p104 = scmp.ne.s32.totalorder %s95, %s96
      %p105 = scmp.eq.s32.totalorder %s22, 0
      %p106 = por %p104, %p105
      %p107 = scmp.ne.s32.totalorder %s95, %s96
      %p108 = scmp.eq.s32.totalorder %s23, 2
      %p109 = por %p107, %p108
      %p111 = scmp.ne.s32.totalorder %s96, %s110
      %p112 = scmp.eq.s32.totalorder %s23, 0
      %p113 = por %p111, %p112
      %s115 = sadd.s32 %s114, 1
      %p118 = scmp.eq.s32.totalorder %s17, 2
      %p119 = scmp.ne.s32.totalorder %s114, %s116
      %p120 = scmp.eq.s32.totalorder %s17, 0
      %p121 = por %p119, %p120
      %p122 = scmp.ne.s32.totalorder %s114, %s116
      %p123 = scmp.eq.s32.totalorder %s22, 2
      %p124 = por %p122, %p123
      %p125 = scmp.ne.s32.totalorder %s116, %s117
      %p126 = scmp.eq.s32.totalorder %s22, 0
      %p127 = por %p125, %p126
      %p128 = scmp.ne.s32.totalorder %s116, %s117
      %p129 = scmp.eq.s32.totalorder %s23, 2
      %p130 = por %p128, %p129
      %p132 = scmp.ne.s32.totalorder %s117, %s131
      %p133 = scmp.eq.s32.totalorder %s23, 0
      %p134 = por %p132, %p133
      %s135 = ssub.s32 %s17, %s24
      %p136 = scmp.eq.s32.totalorder %s135, 0
      %s138 = sadd.s32 %s137, 1
      %s139 = scalar_select %p136, %s137, %s138
      %p142 = pneg %p136
      %p143 = scmp.eq.s32.totalorder %s17, 2
      %p144 = por %p142, %p143
      %p145 = scmp.ne.s32.totalorder %s137, %s140
      %p146 = scmp.eq.s32.totalorder %s17, 0
      %p147 = por %p145, %p146
      %p148 = scmp.ne.s32.totalorder %s137, %s140
      %p149 = scmp.eq.s32.totalorder %s22, 2
      %p150 = por %p148, %p149
      %p151 = scmp.ne.s32.totalorder %s140, %s141
      %p152 = scmp.eq.s32.totalorder %s22, 0
      %p153 = por %p151, %p152
      %p154 = scmp.ne.s32.totalorder %s140, %s141
      %p155 = scmp.eq.s32.totalorder %s23, 2
      %p156 = por %p154, %p155
      %p158 = scmp.ne.s32.totalorder %s141, %s157
      %p159 = scmp.eq.s32.totalorder %s23, 0
      %p160 = por %p158, %p159
      %p161 = scmp.le.s32.totalorder 1, %s17
      %p162 = scmp.lt.s32.totalorder %s17, 4
      %p163 = pnand %p161, %p162
      %p164 = pneg %p163
      // Predicated region
      $region9: #{tpu_custom_call.1} parent=5 // pred_check
        _
      $region10: #{tpu_custom_call.1} parent=5 // pred_check_branch
        %166 = sbr.rel (%p163) target = $region12
      $region11: #{tpu_custom_call.1} parent=5 // pred_region
        %s167 = ssub.s32 %s17, 1
        // Predicated region
        $region13: #{tpu_custom_call.1} parent=11 // pred_check
          %p168 = pneg %p64
        $region14: #{tpu_custom_call.1} parent=11 // pred_check_branch
          %170 = sbr.rel (%p168) target = $region16
        $region15: #{tpu_custom_call.1} parent=11 // pred_region
          %s172 = ssub.s32 4096, 4096
          %173 = vsyncadd [#allocation6], %s172
          %s174 = sshll.u32 [#allocation5], 4
          %s175 = int_to_ptr.vmem [resolvable:$true] %s174
          %180 = dma.hbm_to_vmem [thread:$0]  %s1, 4096, %s175, [#allocation6], 128, 128, 8
        $region16: #{tpu_custom_call.1} parent=11 // pred_fallthru
          _
        // Predicated region
        $region17: #{tpu_custom_call.1} parent=11 // pred_check
          %p181 = pneg %p85
        $region18: #{tpu_custom_call.1} parent=11 // pred_check_branch
          %183 = sbr.rel (%p181) target = $region20
        $region19: #{tpu_custom_call.1} parent=11 // pred_region
          _
        $region20: #{tpu_custom_call.1} parent=11 // pred_fallthru
          _
        // Predicated region
        $region21: #{tpu_custom_call.1} parent=11 // pred_check
          %p184 = pneg %p106
        $region22: #{tpu_custom_call.1} parent=11 // pred_check_branch
          %186 = sbr.rel (%p184) target = $region24
        $region23: #{tpu_custom_call.1} parent=11 // pred_region
          _
        $region24: #{tpu_custom_call.1} parent=11 // pred_fallthru
          _
        // Predicated region
        $region25: #{tpu_custom_call.1} parent=11 // pred_check
          %p187 = pneg %p127
        $region26: #{tpu_custom_call.1} parent=11 // pred_check_branch
          %189 = sbr.rel (%p187) target = $region28
        $region27: #{tpu_custom_call.1} parent=11 // pred_region
          _
        $region28: #{tpu_custom_call.1} parent=11 // pred_fallthru
          _
      $region12: #{tpu_custom_call.1} parent=5 // pred_fallthru
        _
      %p190 = scmp.lt.s32.totalorder %s17, 3
      // Predicated region
      $region29: #{tpu_custom_call.1} parent=5 // pred_check
        %p191 = pneg %p190
      $region30: #{tpu_custom_call.1} parent=5 // pred_check_branch
        %193 = sbr.rel (%p191) target = $region32
      $region31: #{tpu_custom_call.1} parent=5 // pred_region
        // Predicated region
        $region33: #{tpu_custom_call.1} parent=31 // pred_check
          %p194 = pneg %p37
        $region34: #{tpu_custom_call.1} parent=31 // pred_check_branch
          %196 = sbr.rel (%p194) target = $region36
        $region35: #{tpu_custom_call.1} parent=31 // pred_region
          %s197 = sand.u32 %s27, 1
          %s198 = scalar_lea.sflag [#allocation4], %s197
          %s199 = sand.u32 %s27, 1
          %s200 = smul.addr %s199, 32
          %s201 = scalar_lea.vmem [#allocation3], %s200
          %s202 = smul.u32 2, %s17
          %s203 = ssub.s32 5, %s202
          %p204 = scmp.lt.s32.totalorder %s203, 2
          %s205 = scalar_select %p204, %s203, 2
          %s206 = smul.u32 128, %s205
          %s207 = smul.u32 %s206, 2
          %s209 = ssub.s32 512, %s207
          %210 = vsyncadd %s198, %s209
          %p211 = scmp.ne.s32.totalorder 0, %s207
          %s212 = smul.addr %s202, 2
          %s213 = smul.addr %s212, 128
          %s214 = scalar_lea.hbm %s0, %s213
          %s215 = smul.u32 16, %s205
          %s216 = sshll.u32 %s201, 4
          %s217 = int_to_ptr.vmem [resolvable:$true] %s216
          %s218 = sshll.u32 %s215, 4
          %222 = dma.hbm_to_vmem [thread:$0]  (%p211), %s214, %s218, %s217, %s198, 256, 256, 16
        $region36: #{tpu_custom_call.1} parent=31 // pred_fallthru
          _
      $region32: #{tpu_custom_call.1} parent=5 // pred_fallthru
        _
      %p223 = scmp.le.s32.totalorder 1, %s17
      %p224 = scmp.lt.s32.totalorder %s17, 4
      %p225 = pnand %p223, %p224
      %p226 = pneg %p225
      // Predicated region
      $region37: #{tpu_custom_call.1} parent=5 // pred_check
        _
      $region38: #{tpu_custom_call.1} parent=5 // pred_check_branch
        %228 = sbr.rel (%p225) target = $region40
      $region39: #{tpu_custom_call.1} parent=5 // pred_region
        %s229 = ssub.s32 %s17, 1
        %s230 = sand.u32 %s30, 1
        %s231 = scalar_lea.sflag [#allocation4], %s230
        %s232 = sand.u32 %s30, 1
        %s233 = smul.addr %s232, 32
        %s234 = scalar_lea.vmem [#allocation3], %s233
        // Predicated region
        $region41: #{tpu_custom_call.1} parent=39 // pred_check
          %p235 = pneg %p43
        $region42: #{tpu_custom_call.1} parent=39 // pred_check_branch
          %237 = sbr.rel (%p235) target = $region44
        $region43: #{tpu_custom_call.1} parent=39 // pred_region
          %238 = dma.done %s231, 512
        $region44: #{tpu_custom_call.1} parent=39 // pred_fallthru
          _
        // Predicated region
        $region45: #{tpu_custom_call.1} parent=39 // pred_check
          %p239 = pneg %p64
        $region46: #{tpu_custom_call.1} parent=39 // pred_check_branch
          %241 = sbr.rel (%p239) target = $region48
        $region47: #{tpu_custom_call.1} parent=39 // pred_region
          %242 = dma.done [#allocation6], 4096
        $region48: #{tpu_custom_call.1} parent=39 // pred_fallthru
          _
        %s243 = sand.u32 %s30, 1
        %s244 = scalar_lea.sflag [#allocation4], %s243
        %s245 = sand.u32 %s30, 1
        %s246 = smul.addr %s245, 32
        %s247 = scalar_lea.vmem [#allocation3], %s246
        %p248 = pneg %p43
        %p249 = pneg %p40
        %p250 = pneg %p64
        %p251 = pneg %p61
        %p252 = pneg %p85
        %p253 = pneg %p82
        %p254 = pneg %p106
        %p255 = pneg %p103
        %p256 = pneg %p127
        %p257 = pneg %p124
        %p258 = pneg %p153
        %p259 = pneg %p150
        %s260 = sand.u32 %s140, 1
        %s261 = sand.u32 %s140, 1
        %s262 = smul.addr %s261, 16
        %s263 = scalar_lea.vmem [#allocation7], %s262
        %s264 = smul.u32 2, %s22
        %s265 = ssub.s32 5, %s264
        %p266 = scmp.lt.s32.totalorder %s265, 2
        %s267 = scalar_select %p266, %s265, 2
        %s268 = smul.u32 128, %s267
        %s269 = smul.u32 %s268, 2
        %s270 = smul.u32 2, %s22
        %s271 = ssub.s32 5, %s270
        %p272 = scmp.lt.s32.totalorder %s271, 2
        %s273 = scalar_select %p272, %s271, 2
        %s274 = smul.u32 128, %s273
        %v275 = vld [vmem:[%s234] sm:$0xff]
        %v276 = vld [vmem:[%s234 + $0x8] sm:$0xff]
        %v277 = vld [vmem:[%s234 + $0x10] sm:$0xff]
        %v278 = vld [vmem:[%s234 + $0x18] sm:$0xff]
        %v279 = vpack.c.bf16 %v277, %v275
        %v280 = vpack.c.bf16 %v278, %v276
        %v281 = vld [vmem:[#allocation5] sm:$0xff]
        %v282 = vld [vmem:[#allocation5 + $0x8] sm:$0xff]
        %v283 = vld [vmem:[#allocation5 + $0x10] sm:$0xff]
        %v284 = vld [vmem:[#allocation5 + $0x18] sm:$0xff]
        %v285 = vld [vmem:[#allocation5 + $0x20] sm:$0xff]
        %v286 = vld [vmem:[#allocation5 + $0x28] sm:$0xff]
        %v287 = vld [vmem:[#allocation5 + $0x30] sm:$0xff]
        %v288 = vld [vmem:[#allocation5 + $0x38] sm:$0xff]
        %v289 = vld [vmem:[#allocation5 + $0x40] sm:$0xff]
        %v290 = vld [vmem:[#allocation5 + $0x48] sm:$0xff]
        %v291 = vld [vmem:[#allocation5 + $0x50] sm:$0xff]
        %v292 = vld [vmem:[#allocation5 + $0x58] sm:$0xff]
        %v293 = vld [vmem:[#allocation5 + $0x60] sm:$0xff]
        %v294 = vld [vmem:[#allocation5 + $0x68] sm:$0xff]
        %v295 = vld [vmem:[#allocation5 + $0x70] sm:$0xff]
        %v296 = vld [vmem:[#allocation5 + $0x78] sm:$0xff]
        %v297 = vld [vmem:[#allocation5 + $0x80] sm:$0xff]
        %v298 = vld [vmem:[#allocation5 + $0x88] sm:$0xff]
        %v299 = vld [vmem:[#allocation5 + $0x90] sm:$0xff]
        %v300 = vld [vmem:[#allocation5 + $0x98] sm:$0xff]
        %v301 = vld [vmem:[#allocation5 + $0xa0] sm:$0xff]
        %v302 = vld [vmem:[#allocation5 + $0xa8] sm:$0xff]
        %v303 = vld [vmem:[#allocation5 + $0xb0] sm:$0xff]
        %v304 = vld [vmem:[#allocation5 + $0xb8] sm:$0xff]
        %v305 = vld [vmem:[#allocation5 + $0xc0] sm:$0xff]
        %v306 = vld [vmem:[#allocation5 + $0xc8] sm:$0xff]
        %v307 = vld [vmem:[#allocation5 + $0xd0] sm:$0xff]
        %v308 = vld [vmem:[#allocation5 + $0xd8] sm:$0xff]
        %v309 = vld [vmem:[#allocation5 + $0xe0] sm:$0xff]
        %v310 = vld [vmem:[#allocation5 + $0xe8] sm:$0xff]
        %v311 = vld [vmem:[#allocation5 + $0xf0] sm:$0xff]
        %v312 = vld [vmem:[#allocation5 + $0xf8] sm:$0xff]
        %v313 = vld [vmem:[%s2] sm:$0x3]
        %v315 = vlaneseq
        %v316 = vshrl.u32 %v315, 7
        %v317 = vsub.s32 0, %v316
        %v318 = vrot.slane %v313, %v317
        %v319 = vlaneseq
        %v320 = vshrl.u32 %v319, 7
        %v321 = vsub.s32 1, %v320
        %v322 = vrot.slane %v313, %v321
        %v357 = vunpack.c.l.b16 %v281
        %v358 = vunpack.c.h.b16 %v281
        %v359 = vunpack.c.l.b16 %v282
        %v360 = vunpack.c.h.b16 %v282
        %v361 = vunpack.c.l.b16 %v283
        %v362 = vunpack.c.h.b16 %v283
        %v363 = vunpack.c.l.b16 %v284
        %v364 = vunpack.c.h.b16 %v284
        %v365 = vunpack.c.l.b16 %v285
        %v366 = vunpack.c.h.b16 %v285
        %v367 = vunpack.c.l.b16 %v286
        %v368 = vunpack.c.h.b16 %v286
        %v369 = vunpack.c.l.b16 %v287
        %v370 = vunpack.c.h.b16 %v287
        %v371 = vunpack.c.l.b16 %v288
        %v372 = vunpack.c.h.b16 %v288
        %v373 = vunpack.c.l.b16 %v289
        %v374 = vunpack.c.h.b16 %v289
        %v375 = vunpack.c.l.b16 %v290
        %v376 = vunpack.c.h.b16 %v290
        %v377 = vunpack.c.l.b16 %v291
        %v378 = vunpack.c.h.b16 %v291
        %v379 = vunpack.c.l.b16 %v292
        %v380 = vunpack.c.h.b16 %v292
        %v381 = vunpack.c.l.b16 %v293
        %v382 = vunpack.c.h.b16 %v293
        %v383 = vunpack.c.l.b16 %v294
        %v384 = vunpack.c.h.b16 %v294
        %v385 = vunpack.c.l.b16 %v295
        %v386 = vunpack.c.h.b16 %v295
        %v387 = vunpack.c.l.b16 %v296
        %v388 = vunpack.c.h.b16 %v296
        %v389 = vunpack.c.l.b16 %v297
        %v390 = vunpack.c.h.b16 %v297
        %v391 = vunpack.c.l.b16 %v298
        %v392 = vunpack.c.h.b16 %v298
        %v393 = vunpack.c.l.b16 %v299
        %v394 = vunpack.c.h.b16 %v299
        %v395 = vunpack.c.l.b16 %v300
        %v396 = vunpack.c.h.b16 %v300
        %v397 = vunpack.c.l.b16 %v301
        %v398 = vunpack.c.h.b16 %v301
        %v399 = vunpack.c.l.b16 %v302
        %v400 = vunpack.c.h.b16 %v302
        %v401 = vunpack.c.l.b16 %v303
        %v402 = vunpack.c.h.b16 %v303
        %v403 = vunpack.c.l.b16 %v304
        %v404 = vunpack.c.h.b16 %v304
        %v405 = vunpack.c.l.b16 %v305
        %v406 = vunpack.c.h.b16 %v305
        %v407 = vunpack.c.l.b16 %v306
        %v408 = vunpack.c.h.b16 %v306
        %v409 = vunpack.c.l.b16 %v307
        %v410 = vunpack.c.h.b16 %v307
        %v411 = vunpack.c.l.b16 %v308
        %v412 = vunpack.c.h.b16 %v308
        %v413 = vunpack.c.l.b16 %v309
        %v414 = vunpack.c.h.b16 %v309
        %v415 = vunpack.c.l.b16 %v310
        %v416 = vunpack.c.h.b16 %v310
        %v417 = vunpack.c.l.b16 %v311
        %v418 = vunpack.c.h.b16 %v311
        %v419 = vunpack.c.l.b16 %v312
        %v420 = vunpack.c.h.b16 %v312
        %v421 = vpack.c.b16 %v359, %v357
        %v422 = vpack.c.b16 %v360, %v358
        %v423 = vpack.c.b16 %v363, %v361
        %v424 = vpack.c.b16 %v364, %v362
        %v425 = vpack.c.b16 %v367, %v365
        %v426 = vpack.c.b16 %v368, %v366
        %v427 = vpack.c.b16 %v371, %v369
        %v428 = vpack.c.b16 %v372, %v370
        %v429 = vpack.c.b16 %v375, %v373
        %v430 = vpack.c.b16 %v376, %v374
        %v431 = vpack.c.b16 %v379, %v377
        %v432 = vpack.c.b16 %v380, %v378
        %v433 = vpack.c.b16 %v383, %v381
        %v434 = vpack.c.b16 %v384, %v382
        %v435 = vpack.c.b16 %v387, %v385
        %v436 = vpack.c.b16 %v388, %v386
        %v437 = vpack.c.b16 %v391, %v389
        %v438 = vpack.c.b16 %v392, %v390
        %v439 = vpack.c.b16 %v395, %v393
        %v440 = vpack.c.b16 %v396, %v394
        %v441 = vpack.c.b16 %v399, %v397
        %v442 = vpack.c.b16 %v400, %v398
        %v443 = vpack.c.b16 %v403, %v401
        %v444 = vpack.c.b16 %v404, %v402
        %v445 = vpack.c.b16 %v407, %v405
        %v446 = vpack.c.b16 %v408, %v406
        %v447 = vpack.c.b16 %v411, %v409
        %v448 = vpack.c.b16 %v412, %v410
        %v449 = vpack.c.b16 %v415, %v413
        %v450 = vpack.c.b16 %v416, %v414
        %v451 = vpack.c.b16 %v419, %v417
        %v452 = vpack.c.b16 %v420, %v418
        %485 = vmatprep.subr.bf16.mxu0 %v422
        %486 = vmatpush1.bf16.msra.mxu0 %v421
        %487 = vmatprep.subr.bf16.mxu0 %v424
        %488 = vmatpush1.bf16.msra.mxu0 %v423
        %489 = vmatprep.subr.bf16.mxu0 %v426
        %490 = vmatpush1.bf16.msra.mxu0 %v425
        %491 = vmatprep.subr.bf16.mxu0 %v428
        %492 = vmatpush1.bf16.msra.mxu0 %v427
        %493 = vmatprep.subr.bf16.mxu0 %v430
        %494 = vmatpush1.bf16.msra.mxu0 %v429
        %495 = vmatprep.subr.bf16.mxu0 %v432
        %496 = vmatpush1.bf16.msra.mxu0 %v431
        %497 = vmatprep.subr.bf16.mxu0 %v434
        %498 = vmatpush1.bf16.msra.mxu0 %v433
        %499 = vmatprep.subr.bf16.mxu0 %v436
        %500 = vmatpush1.bf16.msra.mxu0 %v435
        %501 = vmatprep.subr.bf16.mxu0 %v438
        %502 = vmatpush1.bf16.msra.mxu0 %v437
        %503 = vmatprep.subr.bf16.mxu0 %v440
        %504 = vmatpush1.bf16.msra.mxu0 %v439
        %505 = vmatprep.subr.bf16.mxu0 %v442
        %506 = vmatpush1.bf16.msra.mxu0 %v441
        %507 = vmatprep.subr.bf16.mxu0 %v444
        %508 = vmatpush1.bf16.msra.mxu0 %v443
        %509 = vmatprep.subr.bf16.mxu0 %v446
        %510 = vmatpush1.bf16.msra.mxu0 %v445
        %511 = vmatprep.subr.bf16.mxu0 %v448
        %512 = vmatpush1.bf16.msra.mxu0 %v447
        %513 = vmatprep.subr.bf16.mxu0 %v450
        %514 = vmatpush1.bf16.msra.mxu0 %v449
        %515 = vmatprep.subr.bf16.mxu0 %v452
        %516 = vmatpush1.bf16.msra.mxu0 %v451
        %517 = vmatprep.mubr.bf16.mxu0 %v280
        %518 = vmatmul.mubr.bf16.gmra.mrb[0].mxu0 %v279
        %v519 = vpop.f32.mrb[0].mxu0
        %v520 = vadd.f32 %v318, %v519
        %v521 = vpop.f32.mrb[0].mxu0
        %v522 = vadd.f32 %v322, %v521
        %v523 = vpop.f32.mrb[0].mxu0
        %v524 = vadd.f32 %v318, %v523
        %v525 = vpop.f32.mrb[0].mxu0
        %v526 = vadd.f32 %v322, %v525
        %527 = vdwg.mxu0
        %v528 = vtanh.pop %v520
        %v529 = vtanh.pop %v524
        %v530 = vxor.u32 %v522, 2147483648
        %v531 = vxor.u32 %v526, 2147483648
        %v532 = vmul.f32 %v530, 1.442695
        %v533 = vpow.pop %v532
        %v534 = vmul.f32 %v531, 1.442695
        %v535 = vpow.pop %v534
        %v536 = vadd.f32 %v533, 1.0
        %v537 = vadd.f32 %v535, 1.0
        %v538 = vrcp.pop %v536
        %v539 = vmul.f32 1.0, %v538
        %v540 = vrcp.pop %v537
        %v541 = vmul.f32 1.0, %v540
        %v542 = vmul.f32 %v528, %v539
        %v543 = vmul.f32 %v529, %v541
        %v544 = vld [vmem:[%s3] sm:$0x1]
        %v546 = vlaneseq
        %v547 = vshrl.u32 %v546, 7
        %v548 = vsub.s32 0, %v547
        %v549 = vrot.slane %v544, %v548
        %v551 = vmul.f32 %v542, %v549
        %v552 = vmul.f32 %v543, %v549
        %553 = vadd.xlane.f32.xlu0 %v551
        %v554 = vpop.xlane.xlu0 %553
        %555 = vadd.xlane.f32.xlu0 %v552
        %v556 = vpop.xlane.xlu0 %555
        %v557 = vld [vmem:[#allocation2] sm:$0x1]
        %v559 = vlaneseq
        %v560 = vshrl.u32 %v559, 7
        %v561 = vsub.s32 0, %v560
        %v562 = vrot.slane %v557, %v561
        %v564 = vadd.f32 %v554, %v562
        %v565 = vadd.f32 %v556, %v562
        %vm566 = vcmask 7168
        %567 = vst.msk [vmem:[%s263] sm:$0xff] %vm566, %v564
        %568 = vst.msk [vmem:[%s263 + $0x8] sm:$0xff] %vm566, %v565
        %s569 = sand.u32 %s140, 1
        %s570 = sand.u32 %s140, 1
        %s571 = smul.addr %s570, 16
        %s572 = scalar_lea.vmem [#allocation7], %s571
        // Predicated region
        $region49: #{tpu_custom_call.1} parent=39 // pred_check
          %p573 = pneg %p150
        $region50: #{tpu_custom_call.1} parent=39 // pred_check_branch
          %575 = sbr.rel (%p573) target = $region52
        $region51: #{tpu_custom_call.1} parent=39 // pred_region
          %s576 = smul.u32 2, %s22
          %s577 = ssub.s32 5, %s576
          %p578 = scmp.lt.s32.totalorder %s577, 2
          %s579 = scalar_select %p578, %s577, 2
          %s580 = smul.u32 128, %s579
          %p581 = scmp.ne.s32.totalorder 0, %s580
          %s582 = smul.addr %s576, 8
          %s583 = scalar_lea.vmem %s5, %s582
          // Predicated region
          $region53: #{tpu_custom_call.1} parent=51 // pred_check
            %p584 = pneg %p581
          $region54: #{tpu_custom_call.1} parent=51 // pred_check_branch
            %586 = sbr.rel (%p584) target = $region56
          $region55: #{tpu_custom_call.1} parent=51 // pred_region
            // Predicated region
            $region57: #{tpu_custom_call.1} parent=55 // pred_check
              _
            $region58: #{tpu_custom_call.1} parent=55 // pred_check_branch
              %588 = sbr.rel (0) target = $region60
            $region59: #{tpu_custom_call.1} parent=55 // pred_region
              // Predicated region
              $region79: #{tpu_custom_call.1} parent=59 // pred_check
                _
              $region80: #{tpu_custom_call.1} parent=59 // pred_check_branch
                %639 = sbr.rel (0) target = $region82
              $region81: #{tpu_custom_call.1} parent=59 // pred_region
                %s640 = sshrl.u32 %s579, 1
                // While loop
                $region83: #{tpu_custom_call.1} parent=81 // loop_pre_header
                  _
                $region84: #{tpu_custom_call.1} parent=81 // loop_header
                  %s642 = sphi 0, %s644
                  %p643 = scmp.ge.s32.totalorder %s642, %s640
                  %s647 = sphi 0, %s656
                  %s648 = sphi %s572, %s659
                  %s649 = sphi %s583, %s660
                $region85: #{tpu_custom_call.1} parent=81 // loop_header_branch
                  %646 = sbr.rel (%p643) target = $region89
                $region86: #{tpu_custom_call.1} parent=81 // loop_body
                  %v650 = vld [vmem:[%s648] sm:$0xff]
                  %651 = vst [vmem:[%s649] sm:$0xff] %v650
                  %v652 = vld [vmem:[%s648 + $0x8] sm:$0xff]
                  %653 = vst [vmem:[%s649 + $0x8] sm:$0xff] %v652
                  %s654 = sadd.s32 1, %s647
                  %p655 = scmp.ge.s32.totalorder %s654, %s640
                  %s656 = scalar_select %p655, 0, %s654
                  %s657 = smul.u32 %s656, 16
                  %s658 = smul.u32 %s656, 16
                  %s659 = scalar_lea.vmem %s572, %s657 [#allocation7]
                  %s660 = scalar_lea.vmem %s583, %s658
                $region87: #{tpu_custom_call.1} parent=81 // loop_footer
                  %s644 = sadd.s32 %s642, 1
                $region88: #{tpu_custom_call.1} parent=81 // loop_footer_branch
                  %641 = sbr.rel target = $region84
                $region89: #{tpu_custom_call.1} parent=81 // loop_exit
                  _
                %s661 = sshrl.u32 %s579, 1
                %s662 = sand.u32 %s579, 1
                %s663 = smul.u32 %s661, 2
                %s664 = smul.u32 8, %s663
                %s665 = scalar_lea.vmem %s572, %s664 [#allocation7]
                %s666 = smul.u32 8, %s663
                %s667 = scalar_lea.vmem %s583, %s666
                // While loop
                $region90: #{tpu_custom_call.1} parent=81 // loop_pre_header
                  _
                $region91: #{tpu_custom_call.1} parent=81 // loop_header
                  %s669 = sphi 0, %s671
                  %p670 = scmp.ge.s32.totalorder %s669, %s662
                  %s674 = sphi 0, %s681
                  %s675 = sphi %s665, %s684
                  %s676 = sphi %s667, %s685
                $region92: #{tpu_custom_call.1} parent=81 // loop_header_branch
                  %673 = sbr.rel (%p670) target = $region96
                $region93: #{tpu_custom_call.1} parent=81 // loop_body
                  %v677 = vld [vmem:[%s675] sm:$0xff]
                  %678 = vst [vmem:[%s676] sm:$0xff] %v677
                  %s679 = sadd.s32 1, %s674
                  %p680 = scmp.ge.s32.totalorder %s679, %s662
                  %s681 = scalar_select %p680, 0, %s679
                  %s682 = smul.u32 %s681, 8
                  %s683 = smul.u32 %s681, 8
                  %s684 = scalar_lea.vmem %s665, %s682 [#allocation7]
                  %s685 = scalar_lea.vmem %s667, %s683
                $region94: #{tpu_custom_call.1} parent=81 // loop_footer
                  %s671 = sadd.s32 %s669, 1
                $region95: #{tpu_custom_call.1} parent=81 // loop_footer_branch
                  %668 = sbr.rel target = $region91
                $region96: #{tpu_custom_call.1} parent=81 // loop_exit
                  _
              $region82: #{tpu_custom_call.1} parent=59 // pred_fallthru
                _
              // Predicated region
              $region97: #{tpu_custom_call.1} parent=59 // pred_check
                _
              $region98: #{tpu_custom_call.1} parent=59 // pred_check_branch
                %687 = sbr.rel target = $region100
              $region99: #{tpu_custom_call.1} parent=59 // pred_region
                _
              $region100: #{tpu_custom_call.1} parent=59 // pred_fallthru
                _
            $region60: #{tpu_custom_call.1} parent=55 // pred_fallthru
              _
            // Predicated region
            $region61: #{tpu_custom_call.1} parent=55 // pred_check
              _
            $region62: #{tpu_custom_call.1} parent=55 // pred_check_branch
              %590 = sbr.rel target = $region64
            $region63: #{tpu_custom_call.1} parent=55 // pred_region
              %s592 = sshrl.u32 %s579, 1
              // While loop
              $region65: #{tpu_custom_call.1} parent=63 // loop_pre_header
                _
              $region66: #{tpu_custom_call.1} parent=63 // loop_header
                %s594 = sphi 0, %s596
                %p595 = scmp.ge.s32.totalorder %s594, %s592
                %s599 = sphi 0, %s608
                %s600 = sphi %s572, %s611
                %s601 = sphi %s583, %s612
              $region67: #{tpu_custom_call.1} parent=63 // loop_header_branch
                %598 = sbr.rel (%p595) target = $region71
              $region68: #{tpu_custom_call.1} parent=63 // loop_body
                %v602 = vld [vmem:[%s600] sm:$0xff]
                %603 = vst [vmem:[%s601] sm:$0xff] %v602
                %v604 = vld [vmem:[%s600 + $0x8] sm:$0xff]
                %605 = vst [vmem:[%s601 + $0x8] sm:$0xff] %v604
                %s606 = sadd.s32 1, %s599
                %p607 = scmp.ge.s32.totalorder %s606, %s592
                %s608 = scalar_select %p607, 0, %s606
                %s609 = smul.u32 %s608, 16
                %s610 = smul.u32 %s608, 16
                %s611 = scalar_lea.vmem %s572, %s609 [#allocation7]
                %s612 = scalar_lea.vmem %s583, %s610
              $region69: #{tpu_custom_call.1} parent=63 // loop_footer
                %s596 = sadd.s32 %s594, 1
              $region70: #{tpu_custom_call.1} parent=63 // loop_footer_branch
                %593 = sbr.rel target = $region66
              $region71: #{tpu_custom_call.1} parent=63 // loop_exit
                _
              %s613 = sshrl.u32 %s579, 1
              %s614 = sand.u32 %s579, 1
              %s615 = smul.u32 %s613, 2
              %s616 = smul.u32 8, %s615
              %s617 = scalar_lea.vmem %s572, %s616 [#allocation7]
              %s618 = smul.u32 8, %s615
              %s619 = scalar_lea.vmem %s583, %s618
              // While loop
              $region72: #{tpu_custom_call.1} parent=63 // loop_pre_header
                _
              $region73: #{tpu_custom_call.1} parent=63 // loop_header
                %s621 = sphi 0, %s623
                %p622 = scmp.ge.s32.totalorder %s621, %s614
                %s626 = sphi 0, %s633
                %s627 = sphi %s617, %s636
                %s628 = sphi %s619, %s637
              $region74: #{tpu_custom_call.1} parent=63 // loop_header_branch
                %625 = sbr.rel (%p622) target = $region78
              $region75: #{tpu_custom_call.1} parent=63 // loop_body
                %v629 = vld [vmem:[%s627] sm:$0xff]
                %630 = vst [vmem:[%s628] sm:$0xff] %v629
                %s631 = sadd.s32 1, %s626
                %p632 = scmp.ge.s32.totalorder %s631, %s614
                %s633 = scalar_select %p632, 0, %s631
                %s634 = smul.u32 %s633, 8
                %s635 = smul.u32 %s633, 8
                %s636 = scalar_lea.vmem %s617, %s634 [#allocation7]
                %s637 = scalar_lea.vmem %s619, %s635
              $region76: #{tpu_custom_call.1} parent=63 // loop_footer
                %s623 = sadd.s32 %s621, 1
              $region77: #{tpu_custom_call.1} parent=63 // loop_footer_branch
                %620 = sbr.rel target = $region73
              $region78: #{tpu_custom_call.1} parent=63 // loop_exit
                _
            $region64: #{tpu_custom_call.1} parent=55 // pred_fallthru
              _
          $region56: #{tpu_custom_call.1} parent=51 // pred_fallthru
            _
          %688 = vnop
        $region52: #{tpu_custom_call.1} parent=39 // pred_fallthru
          _
      $region40: #{tpu_custom_call.1} parent=5 // pred_fallthru
        _
      %p689 = scmp.le.s32.totalorder 2, %s17
      // Predicated region
      $region101: #{tpu_custom_call.1} parent=5 // pred_check
        %p690 = pneg %p689
      $region102: #{tpu_custom_call.1} parent=5 // pred_check_branch
        %692 = sbr.rel (%p690) target = $region104
      $region103: #{tpu_custom_call.1} parent=5 // pred_region
        %s693 = ssub.s32 %s17, 2
        // Predicated region
        $region105: #{tpu_custom_call.1} parent=103 // pred_check
          %p694 = pneg %p156
        $region106: #{tpu_custom_call.1} parent=103 // pred_check_branch
          %696 = sbr.rel (%p694) target = $region108
        $region107: #{tpu_custom_call.1} parent=103 // pred_region
          %s697 = sand.u32 %s141, 1
          %s698 = sand.u32 %s141, 1
          %s699 = smul.addr %s698, 16
          %s700 = scalar_lea.vmem [#allocation7], %s699
        $region108: #{tpu_custom_call.1} parent=103 // pred_fallthru
          _
      $region104: #{tpu_custom_call.1} parent=5 // pred_fallthru
        _
    $region6: #{tpu_custom_call.1} parent=1 // loop_footer
      %s21 = sadd.s32 1, %s17
    $region7: #{tpu_custom_call.1} parent=1 // loop_footer_branch
      %16 = sbr.rel target = $region3
    $region8: #{tpu_custom_call.1} parent=1 // loop_exit
      _
    %701 = vsyncpa [#allocation4], 1
    %s702 = scalar_lea.sflag [#allocation4], 1
    %703 = vsyncpa %s702, 1
    %704 = vsyncpa [#allocation6], 1

</llo_original>
